<compile_context>
chip_gen: v7x
topology: tpu7x:2x2x1
jax: 0.10.0
libtpu: 0.0.40
codegen_flags: <defaults>
</compile_context>

<pallas_src>
import jax
import jax.numpy as jnp
from jax.experimental import pallas as pl
from jax.experimental.pallas import tpu as pltpu


STRATEGY_OPTIONS = ("zero", "median", "sample", "noise")

# Scoped VMEM: safe on v5e/v6e (128 MiB physical) and v7x (64 MiB physical).
_VMEM_LIMIT_BYTES = 48 * 1024 * 1024
# ~4 MiB lane-dense blocks: worst case (noise kernel) is 3 pipelined arrays
# x 2 buffers x 4 MiB + 4 MiB mask scratch = 28 MiB, well under the limit.
_DEFAULT_BLOCK_TARGET_BYTES = 4 << 20


def _choose_th(H, W, itemsize, target_bytes):
    """Sublane tile height: a multiple of 8 dividing H, ~target_bytes per block,
    and (when possible) >= 2 tiles so the parallel h axis can use both v7x TCs."""
    if H % 8 != 0:
        # TODO(synk): pad H to a multiple of 8 instead; a single full-H block is
        # correct but loses pipelining/megacore and may not fit VMEM for huge H.
        return H
    row_bytes = max(1, W * itemsize)
    th = (target_bytes // row_bytes) // 8 * 8
    th = max(8, min(int(th), H))
    while H % th != 0:
        th -= 8
    if th == H and H >= 16:          # force >= 2 spatial tiles for megacore
        half = (H // 2) // 8 * 8
        while half >= 8 and H % half != 0:
            half -= 8
        if half >= 8:
            th = half
    return th


# ---------------------------------------------------------------------------
# Kernel 1: masked fill with a per-channel constant (zero / median strategies).
#   out[c, h, w] = fill[c] if isnan(x[0, h, w]) else x[c, h, w]
# fill[c] lives in SMEM via scalar prefetch; the channel-0 tile is cached in a
# persistent VMEM scratch at c == 0 (channel axis innermost) -> x[0] is read
# from HBM only once per h tile and there is no separate mask input stream.
# ---------------------------------------------------------------------------
def _impute_const_kernel(fill_ref, x_ref, o_ref, mask_ref):
    c = pl.program_id(1)

    @pl.when(c == 0)
    def _():
        mask_ref[...] = x_ref[...]                      # stash channel-0 tile (mask source)

    nan_mask = jnp.isnan(mask_ref[...])                 # (1, TH, W) channel-0 mask
    o_ref[...] = jnp.where(nan_mask, fill_ref[c].astype(o_ref.dtype), x_ref[...])


def pallas_impute_const(x, fill_per_channel, *, block_target_bytes=_DEFAULT_BLOCK_TARGET_BYTES):
    C, H, W = x.shape
    th = _choose_th(H, W, jnp.dtype(x.dtype).itemsize, block_target_bytes)
    n_h = H // th
    fill = jnp.asarray(fill_per_channel, dtype=jnp.float32).reshape(C)
    # TODO(synk): with the scratch mask, x[0] is never re-read from HBM, so the x
    # buffer could be aliased to the output (input_output_aliases) when x is
    # donated; left off here because the demo reuses x across strategies.
    return pl.pallas_call(
        _impute_const_kernel,
        out_shape=jax.ShapeDtypeStruct((C, H, W), x.dtype),
        grid_spec=pltpu.PrefetchScalarGridSpec(
            num_scalar_prefetch=1,
            # Channel axis innermost: the mask scratch written at c == 0 stays
            # valid for the whole inner channel loop of each h tile.
            grid=(n_h, C),
            in_specs=[pl.BlockSpec((1, th, W), lambda h, c, *_: (c, h, 0))],
            out_specs=pl.BlockSpec((1, th, W), lambda h, c, *_: (c, h, 0)),
            scratch_shapes=[pltpu.VMEM((1, th, W), x.dtype)],
        ),
        compiler_params=pltpu.CompilerParams(
            dimension_semantics=("parallel", "arbitrary"),
            vmem_limit_bytes=_VMEM_LIMIT_BYTES),
    )(fill, x)


# ---------------------------------------------------------------------------
# Kernel 2: masked fill with per-channel affine noise (noise strategy).
#   out[c, h, w] = med[c] + std[c] * z[c, h, w]  if isnan(x[0, h, w]) else x[c, h, w]
# med/std live in SMEM (scalar prefetch); z is a standard-normal field drawn in
# JAX (the in-kernel pltpu PRNG has no interpret/CPU lowering).
# ---------------------------------------------------------------------------
def _impute_affine_kernel(med_ref, std_ref, x_ref, z_ref, o_ref, mask_ref):
    c = pl.program_id(1)

    @pl.when(c == 0)
    def _():
        mask_ref[...] = x_ref[...]

    nan_mask = jnp.isnan(mask_ref[...])
    fill = med_ref[c] + std_ref[c] * z_ref[...].astype(jnp.float32)
    o_ref[...] = jnp.where(nan_mask, fill.astype(o_ref.dtype), x_ref[...])


def pallas_impute_affine(x, z, med, std, *, block_target_bytes=_DEFAULT_BLOCK_TARGET_BYTES):
    C, H, W = x.shape
    th = _choose_th(H, W, jnp.dtype(x.dtype).itemsize, block_target_bytes)
    n_h = H // th
    med = jnp.asarray(med, jnp.float32).reshape(C)
    std = jnp.asarray(std, jnp.float32).reshape(C)
    return pl.pallas_call(
        _impute_affine_kernel,
        out_shape=jax.ShapeDtypeStruct((C, H, W), x.dtype),
        grid_spec=pltpu.PrefetchScalarGridSpec(
            num_scalar_prefetch=2,
            grid=(n_h, C),
            in_specs=[
                pl.BlockSpec((1, th, W), lambda h, c, *_: (c, h, 0)),   # x[c] tile
                pl.BlockSpec((1, th, W), lambda h, c, *_: (c, h, 0)),   # z[c] tile
            ],
            out_specs=pl.BlockSpec((1, th, W), lambda h, c, *_: (c, h, 0)),
            scratch_shapes=[pltpu.VMEM((1, th, W), x.dtype)],
        ),
        compiler_params=pltpu.CompilerParams(
            dimension_semantics=("parallel", "arbitrary"),
            vmem_limit_bytes=_VMEM_LIMIT_BYTES),
    )(med, std, x, z)


# ---------------------------------------------------------------------------
# Kernel 3: masked fill with a full per-position fill tensor (sample strategy,
# where the fill genuinely differs per pixel).
# ---------------------------------------------------------------------------
def _impute_full_kernel(x_ref, fill_ref, o_ref, mask_ref):
    c = pl.program_id(1)

    @pl.when(c == 0)
    def _():
        mask_ref[...] = x_ref[...]

    nan_mask = jnp.isnan(mask_ref[...])
    o_ref[...] = jnp.where(nan_mask, fill_ref[...], x_ref[...])


def pallas_impute_full(x, fill, *, block_target_bytes=_DEFAULT_BLOCK_TARGET_BYTES):
    C, H, W = x.shape
    th = _choose_th(H, W, jnp.dtype(x.dtype).itemsize, block_target_bytes)
    n_h = H // th
    return pl.pallas_call(
        _impute_full_kernel,
        out_shape=jax.ShapeDtypeStruct((C, H, W), x.dtype),
        grid_spec=pltpu.PrefetchScalarGridSpec(
            num_scalar_prefetch=0,
            grid=(n_h, C),
            in_specs=[
                pl.BlockSpec((1, th, W), lambda h, c: (c, h, 0)),
                pl.BlockSpec((1, th, W), lambda h, c: (c, h, 0)),
            ],
            out_specs=pl.BlockSpec((1, th, W), lambda h, c: (c, h, 0)),
            scratch_shapes=[pltpu.VMEM((1, th, W), x.dtype)],
        ),
        compiler_params=pltpu.CompilerParams(
            dimension_semantics=("parallel", "arbitrary"),
            vmem_limit_bytes=_VMEM_LIMIT_BYTES),
    )(x, fill.astype(x.dtype))


# ---------------------------------------------------------------------------
# Kernel 4: pipelined NaN-aware per-channel reduction for nanstd.
# Leading "parallel" grid axis (2-way when tile count is even) gives each v7x
# TensorCore its own slice of H; each core accumulates lane-wise partial sums
# of (x - med), (x - med)^2 and the valid count into resident (1, C, W) output
# blocks across its H tiles (inner reduction axis, "arbitrary").  Centering by
# the median avoids catastrophic cancellation in E[x^2] - E[x]^2.
# ---------------------------------------------------------------------------
def _nanstats_kernel(x_ref, med_ref, s_ref, ss_ref, cnt_ref):
    @pl.when(pl.program_id(1) == 0)
    def _():
        s_ref[...] = jnp.zeros_like(s_ref)
        ss_ref[...] = jnp.zeros_like(ss_ref)
        cnt_ref[...] = jnp.zeros_like(cnt_ref)

    x = x_ref[...].astype(jnp.float32)                  # (C, TH, W)
    med = med_ref[...]                                  # (C, 1, 1) per-channel median
    valid = jnp.logical_not(jnp.isnan(x))
    d = jnp.where(valid, x - med, 0.0)                  # centered, NaN -> 0
    s_ref[...] += jnp.sum(d, axis=1)[None]              # (1, C, W) lane-wise partials
    ss_ref[...] += jnp.sum(d * d, axis=1)[None]
    cnt_ref[...] += jnp.sum(valid.astype(jnp.float32), axis=1)[None]


def pallas_nanstats(x, med, *, block_target_bytes=_DEFAULT_BLOCK_TARGET_BYTES):
    C, H, W = x.shape
    th = _choose_th(H, W, jnp.dtype(x.dtype).itemsize * C, block_target_bytes)
    n_h = H // th
    n_par = 2 if (n_h >= 2 and n_h % 2 == 0) else 1     # split across the two v7x TCs
    n_inner = n_h // n_par
    med3 = jnp.asarray(med, jnp.float32).reshape(C, 1, 1)
    stat = jax.ShapeDtypeStruct((n_par, C, W), jnp.float32)
    s_p, ss_p, cnt_p = pl.pallas_call(
        _nanstats_kernel,
        out_shape=(stat, stat, stat),
        grid_spec=pltpu.PrefetchScalarGridSpec(
            num_scalar_prefetch=0,
            grid=(n_par, n_inner),
            in_specs=[
                pl.BlockSpec((C, th, W), lambda p, h: (0, p * n_inner + h, 0)),
                pl.BlockSpec((C, 1, 1), lambda p, h: (0, 0, 0)),
            ],
            out_specs=[pl.BlockSpec((1, C, W), lambda p, h: (p, 0, 0))] * 3,
        ),
        compiler_params=pltpu.CompilerParams(
            dimension_semantics=("parallel", "arbitrary"),
            vmem_limit_bytes=_VMEM_LIMIT_BYTES),
    )(x, med3)
    # Tiny epilogue: fold the per-core partials and the lane axis in JAX.
    return s_p.sum(axis=(0, 2)), ss_p.sum(axis=(0, 2)), cnt_p.sum(axis=(0, 2))


# ---------------------------------------------------------------------------
# ImputeNaN forward.
# ---------------------------------------------------------------------------
def impute_nan_forward(strategy, x, key, *, block_target_bytes=_DEFAULT_BLOCK_TARGET_BYTES):
    assert strategy in STRATEGY_OPTIONS, "Strategy must be one of zero, median, sample, noise"
    C, H, W = x.shape

    if strategy == "zero":
        return pallas_impute_const(x, jnp.zeros((C,), jnp.float32),
                                   block_target_bytes=block_target_bytes)

    if strategy == "median":
        # TODO(synk): nanmedian needs a sort; no clean Pallas equivalent, kept in JAX glue.
        med = jnp.nanmedian(x, axis=(1, 2))
        return pallas_impute_const(x, med, block_target_bytes=block_target_bytes)

    if strategy == "noise":
        med = jnp.nanmedian(x, axis=(1, 2)).astype(jnp.float32)             # (C,)
        s, ss, cnt = pallas_nanstats(x, med, block_target_bytes=block_target_bytes)
        cnt_safe = jnp.maximum(cnt, 1.0)                                    # all-NaN channel -> std 0, not NaN
        mean_shift = s / cnt_safe                                           # E[x - med]
        var = jnp.maximum(ss / cnt_safe - mean_shift * mean_shift, 0.0)     # np.nanstd convention (ddof=0)
        std = jnp.sqrt(var)
        # TODO(synk): pltpu.prng_seed/stateful_normal has no interpret/CPU lowering, so
        # the standard-normal field is drawn in JAX; the per-channel affine transform
        # med[c] + std[c] * z and the masked fill are fused inside the Pallas kernel.
        z = jax.random.normal(key, (C, H, W), dtype=jnp.float32)
        return pallas_impute_affine(x, z, med, std, block_target_bytes=block_target_bytes)

    if strategy == "sample":
        # Like the PyTorch module: values are drawn from x[c] at positions valid in
        # channel 0 (they may still be NaN if channel c is NaN there).
        valid0 = jnp.logical_not(jnp.isnan(x[0])).reshape(-1)               # (H*W,)
        n_valid = valid0.sum()
        # O(H*W): compacted valid-position indices + uniform int draw (replaces
        # jax.random.categorical, which materialized an O((H*W)^2) Gumbel tensor).
        valid_idx = jnp.nonzero(valid0, size=H * W, fill_value=0)[0]        # (H*W,)
        u = jax.random.uniform(key, (C, H * W), dtype=jnp.float32)
        r = jnp.minimum((u * n_valid.astype(jnp.float32)).astype(jnp.int32),
                        jnp.maximum(n_valid - 1, 0))
        src = valid_idx[r]                                                  # (C, H*W) flat positions
        xf = x.reshape(C, H * W)
        # TODO(synk): this gathers a full (C,H,W) fill tensor even though only the NaN
        # positions are consumed; a DMA-gather Pallas kernel over compacted NaN
        # positions would remove ~2 extra HBM passes.
        fill = jnp.take_along_axis(xf, src, axis=1).reshape(C, H, W).astype(x.dtype)
        return pallas_impute_full(x, fill, block_target_bytes=block_target_bytes)

    raise ValueError("Strategy must be one of zero, median, sample, noise")


# ---------------------------------------------------------------------------
if __name__ == "__main__":
    C, H, W = 4, 32, 128
    key = jax.random.PRNGKey(0)
    kx, kmask, kfwd = jax.random.split(key, 3)

    x = jax.random.normal(kx, (C, H, W), dtype=jnp.float32)
    nan_positions = jax.random.bernoulli(kmask, p=0.1, shape=(C, H, W))
    x = jnp.where(nan_positions, jnp.float32(jnp.nan), x)

    # Small block target so the demo exercises multi-tile grids, mask-scratch reuse
    # across channels, and multi-step / 2-way-parallel reduction accumulation.
    tb = 8 * 1024

    outs = {}
    for strat in STRATEGY_OPTIONS:
        out = impute_nan_forward(strat, x, kfwd, block_target_bytes=tb)
        jax.block_until_ready(out)
        outs[strat] = out

    # ---- light correctness checks -----------------------------------------
    mask0 = jnp.isnan(x[0])[None]                        # (1, H, W) channel-0 NaN mask
    full_mask = jnp.broadcast_to(mask0, x.shape)

    def _nan_eq(a, b):
        return (a == b) | (jnp.isnan(a) & jnp.isnan(b))

    ref_zero = jnp.where(mask0, jnp.float32(0.0), x)
    assert bool(jnp.all(_nan_eq(outs["zero"], ref_zero))), "zero-strategy mismatch"

    med = jnp.nanmedian(x, axis=(1, 2)).astype(x.dtype)[:, None, None]
    ref_med = jnp.where(mask0, jnp.broadcast_to(med, x.shape), x)
    assert bool(jnp.all(_nan_eq(outs["median"], ref_med))), "median-strategy mismatch"

    # noise / sample: unmasked positions must be untouched.
    for strat in ("noise", "sample"):
        same = _nan_eq(outs[strat], x)
        assert bool(jnp.all(jnp.where(full_mask, True, same))), f"{strat} altered unmasked values"
    # noise fill must be finite at masked positions.
    assert bool(jnp.all(jnp.where(full_mask, ~jnp.isnan(outs["noise"]), True))), "noise produced NaN fill"

    print("KERNEL_OK")
</pallas_src>

<mosaic_0001>
module attributes {stable_mosaic.version = 11 : i64} {
  func.func @_impute_const_kernel(%arg0: i32, %arg1: i32, %arg2: memref<4xf32, #tpu.memory_space<smem>>, %arg3: memref<1x16x128xf32, #tpu.memory_space<vmem>>, %arg4: memref<1x16x128xf32, #tpu.memory_space<vmem>>, %arg5: memref<1x16x128xf32, #tpu.memory_space<vmem>>) attributes {dimension_semantics = [#tpu.dimension_semantics<parallel>, #tpu.dimension_semantics<arbitrary>], iteration_bounds = array<i64: 2, 4>, scalar_prefetch = 1 : i64, scratch_operands = 1 : i64, tpu.core_type = #tpu.core_type<tc>, window_params = [{transform_indices = @transform_0, window_bounds = array<i64: 1, 16, 128>}, {transform_indices = @transform_1, window_bounds = array<i64: 1, 16, 128>}]} {
    %c0_i32 = arith.constant 0 : i32
    %0 = arith.cmpi eq, %arg1, %c0_i32 : i32
    %1 = arith.extui %0 : i1 to i32
    %c0_i32_0 = arith.constant 0 : i32
    %2 = arith.cmpi ne, %1, %c0_i32_0 : i32
    scf.if %2 {
      %c0_9 = arith.constant 0 : index
      %c0_10 = arith.constant 0 : index
      %c0_11 = arith.constant 0 : index
      %11 = vector.load %arg3[%c0_9, %c0_10, %c0_11] : memref<1x16x128xf32, #tpu.memory_space<vmem>>, vector<1x16x128xf32>
      %c0_12 = arith.constant 0 : index
      %c0_13 = arith.constant 0 : index
      %c0_14 = arith.constant 0 : index
      %12 = vector.load %arg5[%c0_12, %c0_13, %c0_14] : memref<1x16x128xf32, #tpu.memory_space<vmem>>, vector<1x16x128xf32>
      tpu.vector_store %arg5[%c0_12, %c0_13, %c0_14], %11 {strides = array<i32>} : memref<1x16x128xf32, #tpu.memory_space<vmem>>, vector<1x16x128xf32>,
    } else {
    }
    %c0 = arith.constant 0 : index
    %c0_1 = arith.constant 0 : index
    %c0_2 = arith.constant 0 : index
    %3 = vector.load %arg5[%c0, %c0_1, %c0_2] : memref<1x16x128xf32, #tpu.memory_space<vmem>>, vector<1x16x128xf32>
    %4 = arith.cmpf one, %3, %3 : vector<1x16x128xf32>
    %5 = arith.index_cast %arg1 : i32 to index
    %6 = memref.load %arg2[%5] : memref<4xf32, #tpu.memory_space<smem>>
    %c0_3 = arith.constant 0 : index
    %c0_4 = arith.constant 0 : index
    %c0_5 = arith.constant 0 : index
    %7 = vector.load %arg3[%c0_3, %c0_4, %c0_5] : memref<1x16x128xf32, #tpu.memory_space<vmem>>, vector<1x16x128xf32>
    %8 = vector.broadcast %6 : f32 to vector<1x16x128xf32>
    %9 = arith.select %4, %8, %7 : vector<1x16x128xi1>, vector<1x16x128xf32>
    %c0_6 = arith.constant 0 : index
    %c0_7 = arith.constant 0 : index
    %c0_8 = arith.constant 0 : index
    %10 = vector.load %arg4[%c0_6, %c0_7, %c0_8] : memref<1x16x128xf32, #tpu.memory_space<vmem>>, vector<1x16x128xf32>
    tpu.vector_store %arg4[%c0_6, %c0_7, %c0_8], %9 {strides = array<i32>} : memref<1x16x128xf32, #tpu.memory_space<vmem>>, vector<1x16x128xf32>,
    return
  }
  func.func @transform_0(%arg0: i32, %arg1: i32, %arg2: memref<4xf32, #tpu.memory_space<smem>>) -> (i32, i32, i32) {
    %c0_i32 = arith.constant 0 : i32
    %c0_i32_0 = arith.constant 0 : i32
    return %arg1, %arg0, %c0_i32 : i32, i32, i32
  }
  func.func @transform_1(%arg0: i32, %arg1: i32, %arg2: memref<4xf32, #tpu.memory_space<smem>>) -> (i32, i32, i32) {
    %c0_i32 = arith.constant 0 : i32
    %c0_i32_0 = arith.constant 0 : i32
    return %arg1, %arg0, %c0_i32 : i32, i32, i32
  }
}

</mosaic_0001>

<llo_original>
// kernel: tpu_custom_call.1
$region0: #{tpu_custom_call.1}
  #allocation0 [shape = 'u32[]', space=smem, size = 0x4, offset = 0x4, fixed_abs, tag = 'smem constant byte address 0x4 - core index']
  #allocation1 [shape = 'u32[144,128]{1,0:T(1,128)}', space=vmem, size = 0x12000, scoped, tag = 'internal scratch']
  #allocation2 [shape = 'f32[1,16,128]{2,1,0:T(8,128)}', space=vmem, size = 0x2000, scoped, tag = 'scratch operand']
  #allocation3 [shape = 's32[1]{0}', space=sflag, size = 0x4, scoped, tag = 'scoped memory for tpu_custom_call.1']
  #allocation4 [shape = 'u8[512]{0}', space=smem, size = 0x200, scoped, tag = 'prefetched SMEM operand 0']
  %s0 = inlined_call_operand.hbm [shape: f32[4], index: 0, kind: input, shape index: {}]
  %s1 = inlined_call_operand.hbm [shape: f32[4,32,128], index: 1, kind: input, shape index: {}]
  %s2 = inlined_call_operand.hbm [shape: f32[4,32,128], index: 2, kind: output, shape index: {}]
  %s3 = sld [smem:[#allocation0]]
  $region45: #{tpu_custom_call.1} parent=0
    _
  %s5 = ssub.s32 1, %s3
  %s6 = scalar_select 0, %s5, %s3
  %8 = dma.hbm_to_smem %s0, 16, [#allocation4], [#allocation3]
  %9 = dma.done [#allocation3], 16
  %10 = sfence
  $region1: #{tpu_custom_call.1} parent=0
    #allocation5 [shape = 'u8[16384]{0}', space=vmem, size = 0x4000, scoped, tag = 'input window, operand 1']
    #allocation6 [shape = 's32[2]{0}', space=sflag, size = 0x8, scoped, tag = 'scoped memory for tpu_custom_call.1']
    #allocation7 [shape = 's32[2]{0}', space=sflag, size = 0x8, scoped, tag = 'scoped memory for tpu_custom_call.1']
    #allocation8 [shape = 'u8[16384]{0}', space=vmem, size = 0x4000, scoped, tag = 'output window, operand 0']
    %11 = vsyncpa [#allocation6], 0
    %s12 = scalar_lea.sflag [#allocation6], 1
    %13 = vsyncpa %s12, 0
    %14 = vsyncpa [#allocation7], 0
    %s15 = scalar_lea.sflag [#allocation7], 1
    %16 = vsyncpa %s15, 0
    loop: start=0, step=1, limit=10
    $region2: #{tpu_custom_call.1} parent=1 // loop_pre_header
      _
    $region3: #{tpu_custom_call.1} parent=1 // loop_header
      %s18 = sphi 0, %s22
      %p19 = scmp.ge.s32.totalorder %s18, 10
      %s25 = sphi 0, %s37
      %s26 = sphi 0, %s33
      %s27 = sphi 0, %s25
      %s28 = sphi 0, %s26
      %s29 = sphi 0, %s27
      %s30 = sphi 0, %s28
      %s42 = sphi 0, %s44
      %s45 = sphi 0, %s42
      %s46 = sphi 0, %s45
      %s62 = sphi 0, %s46
      %s70 = sphi 0, %s72
      %s73 = sphi 0, %s70
      %s74 = sphi 0, %s73
      %s90 = sphi 0, %s74
    $region4: #{tpu_custom_call.1} parent=1 // loop_header_branch
      %21 = sbr.rel (%p19) target = $region8
    $region5: #{tpu_custom_call.1} parent=1 // loop_body
      %s23 = ssub.s32 %s18, 1
      %s24 = ssub.s32 %s18, 2
      %s31 = sadd.s32 1, %s26
      %p32 = scmp.ge.s32.totalorder %s31, 4
      %s33 = scalar_select %p32, 0, %s31
      %s34 = sadd.s32 1, %s25
      %s35 = scalar_select %p32, %s34, %s25
      %p36 = scmp.ge.s32.totalorder %s35, 2
      %s37 = scalar_select %p36, 0, %s35
      %s38 = ssub.s32 %s26, %s33
      %s39 = ssub.s32 %s25, %s37
      %s40 = sor.u32 %s38, %s39
      %p41 = scmp.eq.s32.totalorder %s40, 0
      %s43 = sadd.s32 %s42, 1
      %s44 = scalar_select %p41, %s42, %s43
      %p47 = pneg %p41
      %p48 = scmp.eq.s32.totalorder %s18, 7
      %p49 = por %p47, %p48
      %p50 = scmp.ne.s32.totalorder %s42, %s45
      %p51 = scmp.eq.s32.totalorder %s18, 0
      %p52 = por %p50, %p51
      %p53 = scmp.ne.s32.totalorder %s42, %s45
      %p54 = scmp.eq.s32.totalorder %s23, 7
      %p55 = por %p53, %p54
      %p56 = scmp.ne.s32.totalorder %s45, %s46
      %p57 = scmp.eq.s32.totalorder %s23, 0
      %p58 = por %p56, %p57
      %p59 = scmp.ne.s32.totalorder %s45, %s46
      %p60 = scmp.eq.s32.totalorder %s24, 7
      %p61 = por %p59, %p60
      %p63 = scmp.ne.s32.totalorder %s46, %s62
      %p64 = scmp.eq.s32.totalorder %s24, 0
      %p65 = por %p63, %p64
      %s66 = ssub.s32 %s26, %s33
      %s67 = ssub.s32 %s25, %s37
      %s68 = sor.u32 %s66, %s67
      %p69 = scmp.eq.s32.totalorder %s68, 0
      %s71 = sadd.s32 %s70, 1
      %s72 = scalar_select %p69, %s70, %s71
      %p75 = pneg %p69
      %p76 = scmp.eq.s32.totalorder %s18, 7
      %p77 = por %p75, %p76
      %p78 = scmp.ne.s32.totalorder %s70, %s73
      %p79 = scmp.eq.s32.totalorder %s18, 0
      %p80 = por %p78, %p79
      %p81 = scmp.ne.s32.totalorder %s70, %s73
      %p82 = scmp.eq.s32.totalorder %s23, 7
      %p83 = por %p81, %p82
      %p84 = scmp.ne.s32.totalorder %s73, %s74
      %p85 = scmp.eq.s32.totalorder %s23, 0
      %p86 = por %p84, %p85
      %p87 = scmp.ne.s32.totalorder %s73, %s74
      %p88 = scmp.eq.s32.totalorder %s24, 7
      %p89 = por %p87, %p88
      %p91 = scmp.ne.s32.totalorder %s74, %s90
      %p92 = scmp.eq.s32.totalorder %s24, 0
      %p93 = por %p91, %p92
      %p94 = scmp.le.s32.totalorder 1, %s18
      %p95 = scmp.lt.s32.totalorder %s18, 9
      %p96 = pnand %p94, %p95
      %p97 = pneg %p96
      // Predicated region
      $region9: #{tpu_custom_call.1} parent=5 // pred_check
        _
      $region10: #{tpu_custom_call.1} parent=5 // pred_check_branch
        %99 = sbr.rel (%p96) target = $region12
      $region11: #{tpu_custom_call.1} parent=5 // pred_region
        %s100 = ssub.s32 %s18, 1
      $region12: #{tpu_custom_call.1} parent=5 // pred_fallthru
        _
      %p101 = scmp.lt.s32.totalorder %s18, 8
      // Predicated region
      $region13: #{tpu_custom_call.1} parent=5 // pred_check
        %p102 = pneg %p101
      $region14: #{tpu_custom_call.1} parent=5 // pred_check_branch
        %104 = sbr.rel (%p102) target = $region16
      $region15: #{tpu_custom_call.1} parent=5 // pred_region
        // Predicated region
        $region17: #{tpu_custom_call.1} parent=15 // pred_check
          %p105 = pneg %p52
        $region18: #{tpu_custom_call.1} parent=15 // pred_check_branch
          %107 = sbr.rel (%p105) target = $region20
        $region19: #{tpu_custom_call.1} parent=15 // pred_region
          %s108 = sand.u32 %s42, 1
          %s109 = scalar_lea.sflag [#allocation6], %s108
          %s110 = sand.u32 %s42, 1
          %s111 = smul.addr %s110, 16
          %s112 = scalar_lea.vmem [#allocation5], %s111
          %s113 = smul.u32 2, %s25
          %s115 = ssub.s32 256, 256
          %116 = vsyncadd %s109, %s115
          %s117 = smul.addr %s26, 4
          %s118 = sadd.s32 %s113, %s117
          %s119 = smul.addr %s118, 128
          %s120 = scalar_lea.hbm %s1, %s119
          %s121 = sshll.u32 %s112, 4
          %s122 = int_to_ptr.vmem [resolvable:$true] %s121
          %127 = dma.hbm_to_vmem [thread:$0]  %s120, 256, %s122, %s109, 128, 128, 8
        $region20: #{tpu_custom_call.1} parent=15 // pred_fallthru
          _
      $region16: #{tpu_custom_call.1} parent=5 // pred_fallthru
        _
      %p128 = scmp.le.s32.totalorder 1, %s18
      %p129 = scmp.lt.s32.totalorder %s18, 9
      %p130 = pnand %p128, %p129
      %p131 = pneg %p130
      // Predicated region
      $region21: #{tpu_custom_call.1} parent=5 // pred_check
        _
      $region22: #{tpu_custom_call.1} parent=5 // pred_check_branch
        %133 = sbr.rel (%p130) target = $region24
      $region23: #{tpu_custom_call.1} parent=5 // pred_region
        %s134 = ssub.s32 %s18, 1
        %s135 = sand.u32 %s45, 1
        %s136 = scalar_lea.sflag [#allocation6], %s135
        %s137 = sand.u32 %s45, 1
        %s138 = smul.addr %s137, 16
        %s139 = scalar_lea.vmem [#allocation5], %s138
        // Predicated region
        $region25: #{tpu_custom_call.1} parent=23 // pred_check
          %p140 = pneg %p58
        $region26: #{tpu_custom_call.1} parent=23 // pred_check_branch
          %142 = sbr.rel (%p140) target = $region28
        $region27: #{tpu_custom_call.1} parent=23 // pred_region
          %143 = dma.done %s136, 256
        $region28: #{tpu_custom_call.1} parent=23 // pred_fallthru
          _
        %s144 = sand.u32 %s45, 1
        %s145 = scalar_lea.sflag [#allocation6], %s144
        %s146 = sand.u32 %s45, 1
        %s147 = smul.addr %s146, 16
        %s148 = scalar_lea.vmem [#allocation5], %s147
        %p149 = pneg %p58
        %p150 = pneg %p55
        %p151 = pneg %p86
        %p152 = pneg %p83
        %s153 = sand.u32 %s73, 1
        %s154 = scalar_lea.sflag [#allocation7], %s153
        %s155 = sand.u32 %s73, 1
        %s156 = smul.addr %s155, 16
        %s157 = scalar_lea.vmem [#allocation8], %s156
        %s158 = smul.u32 2, %s27
        %s159 = smul.u32 2, %s27
        %p160 = scmp.eq.s32.totalorder %s28, 0
        // Predicated region
        $region29: #{tpu_custom_call.1} parent=23 // pred_check
          %p161 = pneg %p160
        $region30: #{tpu_custom_call.1} parent=23 // pred_check_branch
          %163 = sbr.rel (%p161) target = $region32
        $region31: #{tpu_custom_call.1} parent=23 // pred_region
          %v164 = vld [vmem:[%s139] sm:$0xff]
          %v165 = vld [vmem:[%s139 + $0x8] sm:$0xff]
          %166 = vst [vmem:[#allocation2] sm:$0xff] %v164
          %167 = vst [vmem:[#allocation2 + $0x8] sm:$0xff] %v165
        $region32: #{tpu_custom_call.1} parent=23 // pred_fallthru
          _
        %v168 = vld [vmem:[#allocation2] sm:$0xff]
        %v169 = vld [vmem:[#allocation2 + $0x8] sm:$0xff]
        %vm170 = vcmp.ne.f32.partialorder %v168, %v168
        %vm171 = vcmp.ne.f32.partialorder %v169, %v169
        %s172 = sld [smem:[#allocation4 + %s28]]
        %v173 = vld [vmem:[%s139] sm:$0xff]
        %v174 = vld [vmem:[%s139 + $0x8] sm:$0xff]
        %v175 = vstv %s172
        %v176 = vsel %vm170, %v175, %v173
        %v177 = vsel %vm171, %v175, %v174
        %178 = vst [vmem:[%s157] sm:$0xff] %v176
        %179 = vst [vmem:[%s157 + $0x8] sm:$0xff] %v177
        %s180 = sand.u32 %s73, 1
        %s181 = scalar_lea.sflag [#allocation7], %s180
        %s182 = sand.u32 %s73, 1
        %s183 = smul.addr %s182, 16
        %s184 = scalar_lea.vmem [#allocation8], %s183
        // Predicated region
        $region33: #{tpu_custom_call.1} parent=23 // pred_check
          %p185 = pneg %p83
        $region34: #{tpu_custom_call.1} parent=23 // pred_check_branch
          %187 = sbr.rel (%p185) target = $region36
        $region35: #{tpu_custom_call.1} parent=23 // pred_region
          %s188 = smul.u32 2, %s27
          %s190 = ssub.s32 256, 256
          %191 = vsyncadd %s181, %s190
          %s192 = smul.addr %s28, 4
          %s193 = sadd.s32 %s188, %s192
          %s194 = smul.addr %s193, 128
          %s195 = scalar_lea.hbm %s2, %s194
          %s196 = sshll.u32 %s184, 4
          %s197 = int_to_ptr.vmem [resolvable:$true] %s196
          %202 = dma.vmem_to_hbm [thread:$0]  %s197, 256, %s195, %s181, 128, 128, 8
        $region36: #{tpu_custom_call.1} parent=23 // pred_fallthru
          _
      $region24: #{tpu_custom_call.1} parent=5 // pred_fallthru
        _
      %p203 = scmp.le.s32.totalorder 2, %s18
      // Predicated region
      $region37: #{tpu_custom_call.1} parent=5 // pred_check
        %p204 = pneg %p203
      $region38: #{tpu_custom_call.1} parent=5 // pred_check_branch
        %206 = sbr.rel (%p204) target = $region40
      $region39: #{tpu_custom_call.1} parent=5 // pred_region
        %s207 = ssub.s32 %s18, 2
        // Predicated region
        $region41: #{tpu_custom_call.1} parent=39 // pred_check
          %p208 = pneg %p89
        $region42: #{tpu_custom_call.1} parent=39 // pred_check_branch
          %210 = sbr.rel (%p208) target = $region44
        $region43: #{tpu_custom_call.1} parent=39 // pred_region
          %s211 = sand.u32 %s74, 1
          %s212 = scalar_lea.sflag [#allocation7], %s211
          %s213 = sand.u32 %s74, 1
          %s214 = smul.addr %s213, 16
          %s215 = scalar_lea.vmem [#allocation8], %s214
          %216 = dma.done %s212, 256
        $region44: #{tpu_custom_call.1} parent=39 // pred_fallthru
          _
      $region40: #{tpu_custom_call.1} parent=5 // pred_fallthru
        _
    $region6: #{tpu_custom_call.1} parent=1 // loop_footer
      %s22 = sadd.s32 1, %s18
    $region7: #{tpu_custom_call.1} parent=1 // loop_footer_branch
      %17 = sbr.rel target = $region3
    $region8: #{tpu_custom_call.1} parent=1 // loop_exit
      _
    %217 = vsyncpa [#allocation6], 1
    %s218 = scalar_lea.sflag [#allocation6], 1
    %219 = vsyncpa %s218, 1
    %220 = vsyncpa [#allocation7], 1
    %s221 = scalar_lea.sflag [#allocation7], 1
    %222 = vsyncpa %s221, 1

</llo_original>
